<compile_context>
chip_gen: v5e
topology: v5e:2x2
jax: 0.10.0
libtpu: 0.0.40
codegen_flags: <defaults>
</compile_context>

<pallas_src>
import functools

import jax
import jax.numpy as jnp
from jax.experimental import pallas as pl
from jax.experimental.pallas import tpu as pltpu


def _make_kernel(use_bf16):
    def kernel(g_ref, x_ref, w_ref, o_ref):
        # g_ref: (1, 1, Cin)   lane-dense gate (pre-sigmoid)
        # x_ref: (1, Cin, TM)  pixel tile
        # w_ref: (TC, Cin)     1x1-conv weight rows (may already be bf16)
        # o_ref: (1, TC, TM)
        sig = jax.nn.sigmoid(g_ref[0].astype(jnp.float32))        # (1, Cin), ~Cin/128 vregs on EUP
        wg = w_ref[...].astype(jnp.float32) * sig                  # fold gate into weight (sublane bcast)
        x = x_ref[0]                                               # (Cin, TM)
        if use_bf16:                                               # bf16 MXU path (v6e/v7x native)
            wg = wg.astype(jnp.bfloat16)
            x = x.astype(jnp.bfloat16)
        o_ref[0] = jnp.dot(wg, x, preferred_element_type=jnp.float32
                           ).astype(o_ref.dtype)
    return kernel


def _tensorcores_per_chip():
    """Best-effort TensorCores-per-chip query (v7x: 2, v5e/v6e: 1)."""
    try:
        kind = jax.devices()[0].device_kind.lower()
        if "v7" in kind:
            return 2
    except Exception:
        pass
    return 1


@functools.partial(jax.jit, static_argnames=("use_bf16", "num_cores"))
def _sigmoid_mul_conv1x1_impl(x_nchw, gate_nc11, weight_oi11, *, use_bf16, num_cores):
    N, Cin, H, W = x_nchw.shape
    Cout = weight_oi11.shape[0]
    HW = H * W

    # Free reshapes only -- no transposes, no extra HBM round trips.
    x_rows = x_nchw.reshape(N, Cin, HW)            # [N, Cin, HW]
    gate = gate_nc11.reshape(N, 1, Cin)            # [N, 1, Cin]   lane-dense gate
    w = weight_oi11.reshape(Cout, Cin)             # [Cout, Cin]   (no .T needed)

    # Pixel-axis tiling.  Real module: HW=196 -> single full-dim block (no
    # (8,128) constraint when block dim == full dim).  Only very large HW is
    # tiled, with a lane-dense 128-multiple tile (512 is safe on v7x's 64 MiB
    # VMEM even at Cin=1200); edge-block OOB x reads only feed output columns
    # that are masked on store.
    tm = HW if HW <= 1024 else 512
    n_pix = pl.cdiv(HW, tm)

    # Cout tiling: introduced only when an extra parallel axis is needed to
    # feed a second TensorCore (v7x megacore, N=1).  Edge Cout block (e.g.
    # 200 -> 128 + 72) reads garbage weight rows that only feed masked output
    # rows -- safe.
    if num_cores > 1 and (N * n_pix) < num_cores and Cout > 128:
        tc = 128
    else:
        tc = Cout
    n_cout = pl.cdiv(Cout, tc)

    grid = (N, n_cout, n_pix)

    out_rows = pl.pallas_call(
        _make_kernel(use_bf16),
        out_shape=jax.ShapeDtypeStruct((N, Cout, HW), x_nchw.dtype),
        grid=grid,
        in_specs=[
            pl.BlockSpec((1, 1, Cin), lambda b, c, m: (b, 0, 0)),   # gate: one 5 KB burst / batch
            pl.BlockSpec((1, Cin, tm), lambda b, c, m: (b, 0, m)),  # x pixel tile
            pl.BlockSpec((tc, Cin), lambda b, c, m: (c, 0)),        # weight rows (VMEM-resident)
        ],
        out_specs=pl.BlockSpec((1, tc, tm), lambda b, c, m: (b, c, m)),
        compiler_params=pltpu.CompilerParams(
            dimension_semantics=("parallel", "parallel", "parallel")),
    )(gate, x_rows, w)

    return out_rows.reshape(N, Cout, H, W)         # free reshape back to NCHW


def sigmoid_mul_conv1x1(x_nchw, gate_nc11, weight_oi11, *, use_bf16=True, num_cores=None):
    """Fused sigmoid(gate) * x followed by a 1x1 conv (no bias). NCHW in/out.

    x_nchw:      [N, Cin, H, W]
    gate_nc11:   [N, Cin, 1, 1]    (pre-sigmoid)
    weight_oi11: [Cout, Cin, 1, 1] (f32 or, preferably, bf16 cast once at init)
    """
    if num_cores is None:
        num_cores = _tensorcores_per_chip()
    return _sigmoid_mul_conv1x1_impl(x_nchw, gate_nc11, weight_oi11,
                                     use_bf16=use_bf16, num_cores=num_cores)


if __name__ == "__main__":
    key = jax.random.PRNGKey(0)
    kx, kg, kw, kx2, kg2, kw2 = jax.random.split(key, 6)

    # --- Test 1: f32 path, batch grid axis exercised. Shapes scaled down from
    #     the module (orig N=1, Cin=1200, Cout=200, H=W=14; keep HW=196). ---
    N, Cin, Cout, H, W = 2, 120, 40, 14, 14
    x358 = jax.random.normal(kx, (N, Cin, H, W), dtype=jnp.float32)
    x362 = jax.random.normal(kg, (N, Cin, 1, 1), dtype=jnp.float32)
    weight = jax.random.normal(kw, (Cout, Cin, 1, 1), dtype=jnp.float32) * 0.05

    out = sigmoid_mul_conv1x1(x358, x362, weight, use_bf16=False)
    out = jax.block_until_ready(out)

    ref = jnp.einsum("nchw,oc->nohw", x358 * jax.nn.sigmoid(x362),
                     weight.reshape(Cout, Cin),
                     precision=jax.lax.Precision.HIGHEST)
    assert out.shape == (N, Cout, H, W)
    err1 = float(jnp.max(jnp.abs(out - ref)))
    assert jnp.allclose(out, ref, atol=1e-3, rtol=1e-3), err1

    # --- Test 2: default bf16 fast path, weight cast to bf16 once at "init",
    #     N=1 and Cout>128 so the Cout-tiled (megacore) branch + masked edge
    #     block are exercised. ---
    N2, Cin2, Cout2 = 1, 120, 200
    x358b = jax.random.normal(kx2, (N2, Cin2, H, W), dtype=jnp.float32)
    x362b = jax.random.normal(kg2, (N2, Cin2, 1, 1), dtype=jnp.float32)
    weight_b = jax.random.normal(kw2, (Cout2, Cin2, 1, 1), dtype=jnp.float32) * 0.05
    weight_b_bf16 = weight_b.astype(jnp.bfloat16)   # cast once at init, not per call

    out2 = sigmoid_mul_conv1x1(x358b, x362b, weight_b_bf16, use_bf16=True, num_cores=2)
    out2 = jax.block_until_ready(out2)

    ref2 = jnp.einsum("nchw,oc->nohw", x358b * jax.nn.sigmoid(x362b),
                      weight_b_bf16.astype(jnp.float32).reshape(Cout2, Cin2),
                      precision=jax.lax.Precision.HIGHEST)
    assert out2.shape == (N2, Cout2, H, W)
    err2 = float(jnp.max(jnp.abs(out2 - ref2)))
    assert jnp.allclose(out2, ref2, atol=5e-2, rtol=5e-2), err2

    print("KERNEL_OK")
</pallas_src>

<mosaic_0001>
module attributes {stable_mosaic.version = 11 : i64} {
  func.func @kernel(%arg0: i32, %arg1: i32, %arg2: i32, %arg3: memref<1x1x120xf32, #tpu.memory_space<vmem>>, %arg4: memref<1x120x196xf32, #tpu.memory_space<vmem>>, %arg5: memref<40x120xf32, #tpu.memory_space<vmem>>, %arg6: memref<1x40x196xf32, #tpu.memory_space<vmem>>) attributes {dimension_semantics = [#tpu.dimension_semantics<parallel>, #tpu.dimension_semantics<parallel>, #tpu.dimension_semantics<parallel>], iteration_bounds = array<i64: 2, 1, 1>, scalar_prefetch = 0 : i64, scratch_operands = 0 : i64, tpu.core_type = #tpu.core_type<tc>, window_params = [{transform_indices = @transform_0, window_bounds = array<i64: 1, 1, 120>}, {transform_indices = @transform_1, window_bounds = array<i64: 1, 120, 196>}, {transform_indices = @transform_2, window_bounds = array<i64: 40, 120>}, {transform_indices = @transform_3, window_bounds = array<i64: 1, 40, 196>}]} {
    %c0 = arith.constant 0 : index
    %c0_0 = arith.constant 0 : index
    %c0_1 = arith.constant 0 : index
    %0 = vector.load %arg3[%c0, %c0_0, %c0_1] : memref<1x1x120xf32, #tpu.memory_space<vmem>>, vector<1x1x120xf32>
    %1 = vector.shape_cast %0 : vector<1x1x120xf32> to vector<1x120xf32>
    %2 = arith.negf %1 : vector<1x120xf32>
    %3 = math.exp %2 : vector<1x120xf32>
    %cst = arith.constant 1.000000e+00 : f32
    %4 = vector.broadcast %cst : f32 to vector<1x120xf32>
    %5 = arith.addf %4, %3 : vector<1x120xf32>
    %6 = arith.divf %4, %5 : vector<1x120xf32>
    %c0_2 = arith.constant 0 : index
    %c0_3 = arith.constant 0 : index
    %7 = vector.load %arg5[%c0_2, %c0_3] : memref<40x120xf32, #tpu.memory_space<vmem>>, vector<40x120xf32>
    %8 = vector.broadcast %6 : vector<1x120xf32> to vector<40x120xf32>
    %9 = arith.mulf %7, %8 : vector<40x120xf32>
    %c0_4 = arith.constant 0 : index
    %c0_5 = arith.constant 0 : index
    %c0_6 = arith.constant 0 : index
    %10 = vector.load %arg4[%c0_4, %c0_5, %c0_6] : memref<1x120x196xf32, #tpu.memory_space<vmem>>, vector<1x120x196xf32>
    %11 = vector.shape_cast %10 : vector<1x120x196xf32> to vector<120x196xf32>
    %cst_7 = arith.constant dense<0.000000e+00> : vector<40x196xf32>
    %12 = tpu.matmul %9, %11, %cst_7 {dimension_numbers = #tpu.dot_dimension_numbers<[1], [0], [0], [1], [0, 0, 1, 1], [], []>} : vector<40x120xf32>, vector<120x196xf32>, vector<40x196xf32> -> vector<40x196xf32>
    %c0_8 = arith.constant 0 : index
    %c0_9 = arith.constant 0 : index
    %c0_10 = arith.constant 0 : index
    %13 = vector.load %arg6[%c0_8, %c0_9, %c0_10] : memref<1x40x196xf32, #tpu.memory_space<vmem>>, vector<1x40x196xf32>
    %14 = vector.shape_cast %13 : vector<1x40x196xf32> to vector<40x196xf32>
    %15 = vector.shape_cast %12 : vector<40x196xf32> to vector<1x40x196xf32>
    tpu.vector_store %arg6[%c0_8, %c0_9, %c0_10], %15 {strides = array<i32>} : memref<1x40x196xf32, #tpu.memory_space<vmem>>, vector<1x40x196xf32>,
    return
  }
  func.func @transform_0(%arg0: i32, %arg1: i32, %arg2: i32) -> (i32, i32, i32) {
    %c0_i32 = arith.constant 0 : i32
    %c0_i32_0 = arith.constant 0 : i32
    %c0_i32_1 = arith.constant 0 : i32
    return %arg0, %c0_i32, %c0_i32_0 : i32, i32, i32
  }
  func.func @transform_1(%arg0: i32, %arg1: i32, %arg2: i32) -> (i32, i32, i32) {
    %c0_i32 = arith.constant 0 : i32
    %c0_i32_0 = arith.constant 0 : i32
    return %arg0, %c0_i32, %arg2 : i32, i32, i32
  }
  func.func @transform_2(%arg0: i32, %arg1: i32, %arg2: i32) -> (i32, i32) {
    %c0_i32 = arith.constant 0 : i32
    %c0_i32_0 = arith.constant 0 : i32
    return %arg1, %c0_i32 : i32, i32
  }
  func.func @transform_3(%arg0: i32, %arg1: i32, %arg2: i32) -> (i32, i32, i32) {
    %c0_i32 = arith.constant 0 : i32
    return %arg0, %arg1, %arg2 : i32, i32, i32
  }
}

</mosaic_0001>

<llo_original>
// kernel: _sigmoid_mul_conv1x1_impl.1
$region0: #{_sigmoid_mul_conv1x1_impl.1}
  #allocation0 [shape = 'u32[]', space=smem, size = 0x4, offset = 0x4, fixed_abs, tag = 'smem constant byte address 0x4 - core index']
  #allocation1 [shape = 'u32[72,128]{1,0:T(1,128)}', space=vmem, size = 0x9000, scoped, tag = 'internal scratch']
  %s0 = inlined_call_operand.vmem [shape: f32[2,1,120], index: 0, kind: input, shape index: {}]
  %s1 = inlined_call_operand.vmem [shape: f32[2,120,196], index: 1, kind: input, shape index: {}]
  %s2 = inlined_call_operand.vmem [shape: f32[40,120], index: 2, kind: input, shape index: {}]
  %s3 = inlined_call_operand.vmem [shape: f32[2,40,196], index: 3, kind: output, shape index: {}]
  %s4 = sld [smem:[#allocation0]]
  $region45: #{_sigmoid_mul_conv1x1_impl.1} parent=0
    _
  %s6 = ssub.s32 1, %s4
  %s7 = scalar_select 0, %s6, %s4
  loop: start=0, step=1, limit=4
  $region2: #{_sigmoid_mul_conv1x1_impl.1} parent=0 // loop_pre_header
    _
  $region3: #{_sigmoid_mul_conv1x1_impl.1} parent=0 // loop_header
    %s9 = sphi 0, %s13
    %p10 = scmp.ge.s32.totalorder %s9, 4
    %s16 = sphi 0, %s35
    %s17 = sphi 0, %s31
    %s18 = sphi 0, %s27
    %s19 = sphi 0, %s16
    %s20 = sphi 0, %s17
    %s21 = sphi 0, %s18
    %s22 = sphi 0, %s19
    %s23 = sphi 0, %s20
    %s24 = sphi 0, %s21
    %s38 = sphi 0, %s40
    %s41 = sphi 0, %s38
    %s42 = sphi 0, %s41
    %s58 = sphi 0, %s42
    %s66 = sphi 0, %s68
    %s69 = sphi 0, %s66
    %s70 = sphi 0, %s69
    %s86 = sphi 0, %s70
    %s92 = sphi 0, %s94
    %s95 = sphi 0, %s92
    %s96 = sphi 0, %s95
    %s112 = sphi 0, %s96
    %s122 = sphi 0, %s124
    %s125 = sphi 0, %s122
    %s126 = sphi 0, %s125
    %s142 = sphi 0, %s126
  $region4: #{_sigmoid_mul_conv1x1_impl.1} parent=0 // loop_header_branch
    %12 = sbr.rel (%p10) target = $region8
  $region5: #{_sigmoid_mul_conv1x1_impl.1} parent=0 // loop_body
    %s14 = ssub.s32 %s9, 1
    %s15 = ssub.s32 %s9, 2
    %s25 = sadd.s32 1, %s18
    %p26 = scmp.ge.s32.totalorder %s25, 1
    %s27 = scalar_select %p26, 0, %s25
    %s28 = sadd.s32 1, %s17
    %s29 = scalar_select %p26, %s28, %s17
    %p30 = scmp.ge.s32.totalorder %s29, 1
    %s31 = scalar_select %p30, 0, %s29
    %s32 = sadd.s32 1, %s16
    %s33 = scalar_select %p30, %s32, %s16
    %p34 = scmp.ge.s32.totalorder %s33, 2
    %s35 = scalar_select %p34, 0, %s33
    %s36 = ssub.s32 %s16, %s35
    %p37 = scmp.eq.s32.totalorder %s36, 0
    %s39 = sadd.s32 %s38, 1
    %s40 = scalar_select %p37, %s38, %s39
    %p43 = pneg %p37
    %p44 = scmp.eq.s32.totalorder %s9, 1
    %p45 = por %p43, %p44
    %p46 = scmp.ne.s32.totalorder %s38, %s41
    %p47 = scmp.eq.s32.totalorder %s9, 0
    %p48 = por %p46, %p47
    %p49 = scmp.ne.s32.totalorder %s38, %s41
    %p50 = scmp.eq.s32.totalorder %s14, 1
    %p51 = por %p49, %p50
    %p52 = scmp.ne.s32.totalorder %s41, %s42
    %p53 = scmp.eq.s32.totalorder %s14, 0
    %p54 = por %p52, %p53
    %p55 = scmp.ne.s32.totalorder %s41, %s42
    %p56 = scmp.eq.s32.totalorder %s15, 1
    %p57 = por %p55, %p56
    %p59 = scmp.ne.s32.totalorder %s42, %s58
    %p60 = scmp.eq.s32.totalorder %s15, 0
    %p61 = por %p59, %p60
    %s62 = ssub.s32 %s16, %s35
    %s63 = ssub.s32 %s18, %s27
    %s64 = sor.u32 %s62, %s63
    %p65 = scmp.eq.s32.totalorder %s64, 0
    %s67 = sadd.s32 %s66, 1
    %s68 = scalar_select %p65, %s66, %s67
    %p71 = pneg %p65
    %p72 = scmp.eq.s32.totalorder %s9, 1
    %p73 = por %p71, %p72
    %p74 = scmp.ne.s32.totalorder %s66, %s69
    %p75 = scmp.eq.s32.totalorder %s9, 0
    %p76 = por %p74, %p75
    %p77 = scmp.ne.s32.totalorder %s66, %s69
    %p78 = scmp.eq.s32.totalorder %s14, 1
    %p79 = por %p77, %p78
    %p80 = scmp.ne.s32.totalorder %s69, %s70
    %p81 = scmp.eq.s32.totalorder %s14, 0
    %p82 = por %p80, %p81
    %p83 = scmp.ne.s32.totalorder %s69, %s70
    %p84 = scmp.eq.s32.totalorder %s15, 1
    %p85 = por %p83, %p84
    %p87 = scmp.ne.s32.totalorder %s70, %s86
    %p88 = scmp.eq.s32.totalorder %s15, 0
    %p89 = por %p87, %p88
    %s90 = ssub.s32 %s17, %s31
    %p91 = scmp.eq.s32.totalorder %s90, 0
    %s93 = sadd.s32 %s92, 1
    %s94 = scalar_select %p91, %s92, %s93
    %p97 = pneg %p91
    %p98 = scmp.eq.s32.totalorder %s9, 1
    %p99 = por %p97, %p98
    %p100 = scmp.ne.s32.totalorder %s92, %s95
    %p101 = scmp.eq.s32.totalorder %s9, 0
    %p102 = por %p100, %p101
    %p103 = scmp.ne.s32.totalorder %s92, %s95
    %p104 = scmp.eq.s32.totalorder %s14, 1
    %p105 = por %p103, %p104
    %p106 = scmp.ne.s32.totalorder %s95, %s96
    %p107 = scmp.eq.s32.totalorder %s14, 0
    %p108 = por %p106, %p107
    %p109 = scmp.ne.s32.totalorder %s95, %s96
    %p110 = scmp.eq.s32.totalorder %s15, 1
    %p111 = por %p109, %p110
    %p113 = scmp.ne.s32.totalorder %s96, %s112
    %p114 = scmp.eq.s32.totalorder %s15, 0
    %p115 = por %p113, %p114
    %s116 = ssub.s32 %s16, %s35
    %s117 = ssub.s32 %s17, %s31
    %s118 = sor.u32 %s116, %s117
    %s119 = ssub.s32 %s18, %s27
    %s120 = sor.u32 %s118, %s119
    %p121 = scmp.eq.s32.totalorder %s120, 0
    %s123 = sadd.s32 %s122, 1
    %s124 = scalar_select %p121, %s122, %s123
    %p127 = pneg %p121
    %p128 = scmp.eq.s32.totalorder %s9, 1
    %p129 = por %p127, %p128
    %p130 = scmp.ne.s32.totalorder %s122, %s125
    %p131 = scmp.eq.s32.totalorder %s9, 0
    %p132 = por %p130, %p131
    %p133 = scmp.ne.s32.totalorder %s122, %s125
    %p134 = scmp.eq.s32.totalorder %s14, 1
    %p135 = por %p133, %p134
    %p136 = scmp.ne.s32.totalorder %s125, %s126
    %p137 = scmp.eq.s32.totalorder %s14, 0
    %p138 = por %p136, %p137
    %p139 = scmp.ne.s32.totalorder %s125, %s126
    %p140 = scmp.eq.s32.totalorder %s15, 1
    %p141 = por %p139, %p140
    %p143 = scmp.ne.s32.totalorder %s126, %s142
    %p144 = scmp.eq.s32.totalorder %s15, 0
    %p145 = por %p143, %p144
    %p146 = scmp.le.s32.totalorder 1, %s9
    %p147 = scmp.lt.s32.totalorder %s9, 3
    %p148 = pnand %p146, %p147
    %p149 = pneg %p148
    // Predicated region
    $region9: #{_sigmoid_mul_conv1x1_impl.1} parent=5 // pred_check
      _
    $region10: #{_sigmoid_mul_conv1x1_impl.1} parent=5 // pred_check_branch
      %151 = sbr.rel (%p148) target = $region12
    $region11: #{_sigmoid_mul_conv1x1_impl.1} parent=5 // pred_region
      %s152 = ssub.s32 %s9, 1
      // Predicated region
      $region13: #{_sigmoid_mul_conv1x1_impl.1} parent=11 // pred_check
        %p153 = pneg %p108
      $region14: #{_sigmoid_mul_conv1x1_impl.1} parent=11 // pred_check_branch
        %155 = sbr.rel (%p153) target = $region16
      $region15: #{_sigmoid_mul_conv1x1_impl.1} parent=11 // pred_region
        %s156 = smul.u32 5, %s20
        %p157 = scmp.lt.s32.totalorder %s156, 4
        %s158 = scalar_select %p157, %s156, 4
        %s159 = smul.addr %s158, 8
        %s160 = scalar_lea.vmem %s2, %s159
        %s161 = smul.u32 5, %s20
      $region16: #{_sigmoid_mul_conv1x1_impl.1} parent=11 // pred_fallthru
        _
    $region12: #{_sigmoid_mul_conv1x1_impl.1} parent=5 // pred_fallthru
      _
    %p162 = scmp.lt.s32.totalorder %s9, 2
    // Predicated region
    $region17: #{_sigmoid_mul_conv1x1_impl.1} parent=5 // pred_check
      %p163 = pneg %p162
    $region18: #{_sigmoid_mul_conv1x1_impl.1} parent=5 // pred_check_branch
      %165 = sbr.rel (%p163) target = $region20
    $region19: #{_sigmoid_mul_conv1x1_impl.1} parent=5 // pred_region
      // Predicated region
      $region21: #{_sigmoid_mul_conv1x1_impl.1} parent=19 // pred_check
        %p166 = pneg %p48
      $region22: #{_sigmoid_mul_conv1x1_impl.1} parent=19 // pred_check_branch
        %168 = sbr.rel (%p166) target = $region24
      $region23: #{_sigmoid_mul_conv1x1_impl.1} parent=19 // pred_region
        %p169 = scmp.lt.s32.totalorder %s16, 1
        %s170 = scalar_select %p169, %s16, 1
        %s171 = scalar_lea.vmem %s0, %s170
      $region24: #{_sigmoid_mul_conv1x1_impl.1} parent=19 // pred_fallthru
        _
      // Predicated region
      $region25: #{_sigmoid_mul_conv1x1_impl.1} parent=19 // pred_check
        %p172 = pneg %p76
      $region26: #{_sigmoid_mul_conv1x1_impl.1} parent=19 // pred_check_branch
        %174 = sbr.rel (%p172) target = $region28
      $region27: #{_sigmoid_mul_conv1x1_impl.1} parent=19 // pred_region
        %s175 = smul.u32 2, %s18
        %p176 = scmp.lt.s32.totalorder %s16, 1
        %s177 = scalar_select %p176, %s16, 1
        %p178 = scmp.lt.s32.totalorder %s175, 1
        %s179 = scalar_select %p178, %s175, 1
        %s180 = smul.addr %s177, 30
        %s181 = sadd.s32 %s179, %s180
        %s182 = smul.addr %s181, 8
        %s183 = scalar_lea.vmem %s1, %s182
        %s184 = smul.u32 2, %s18
      $region28: #{_sigmoid_mul_conv1x1_impl.1} parent=19 // pred_fallthru
        _
    $region20: #{_sigmoid_mul_conv1x1_impl.1} parent=5 // pred_fallthru
      _
    %p185 = scmp.le.s32.totalorder 1, %s9
    %p186 = scmp.lt.s32.totalorder %s9, 3
    %p187 = pnand %p185, %p186
    %p188 = pneg %p187
    // Predicated region
    $region29: #{_sigmoid_mul_conv1x1_impl.1} parent=5 // pred_check
      _
    $region30: #{_sigmoid_mul_conv1x1_impl.1} parent=5 // pred_check_branch
      %190 = sbr.rel (%p187) target = $region32
    $region31: #{_sigmoid_mul_conv1x1_impl.1} parent=5 // pred_region
      %s191 = ssub.s32 %s9, 1
      %p192 = scmp.lt.s32.totalorder %s19, 1
      %s193 = scalar_select %p192, %s19, 1
      %s194 = scalar_lea.vmem %s0, %s193
      %p195 = pneg %p54
      %p196 = pneg %p51
      %s197 = smul.u32 2, %s21
      %p198 = scmp.lt.s32.totalorder %s19, 1
      %s199 = scalar_select %p198, %s19, 1
      %p200 = scmp.lt.s32.totalorder %s197, 1
      %s201 = scalar_select %p200, %s197, 1
      %s202 = smul.addr %s199, 30
      %s203 = sadd.s32 %s201, %s202
      %s204 = smul.addr %s203, 8
      %s205 = scalar_lea.vmem %s1, %s204
      %p206 = pneg %p82
      %p207 = pneg %p79
      %s208 = smul.u32 5, %s20
      %p209 = scmp.lt.s32.totalorder %s208, 4
      %s210 = scalar_select %p209, %s208, 4
      %s211 = smul.addr %s210, 8
      %s212 = scalar_lea.vmem %s2, %s211
      %p213 = pneg %p108
      %p214 = pneg %p105
      %p215 = pneg %p138
      %p216 = pneg %p135
      %s217 = smul.u32 5, %s20
      %s218 = smul.u32 2, %s21
      %p219 = scmp.lt.s32.totalorder %s19, 1
      %s220 = scalar_select %p219, %s19, 1
      %p221 = scmp.lt.s32.totalorder %s217, 4
      %s222 = scalar_select %p221, %s217, 4
      %p223 = scmp.lt.s32.totalorder %s218, 1
      %s224 = scalar_select %p223, %s218, 1
      %s225 = smul.addr %s222, 2
      %s226 = sadd.s32 %s224, %s225
      %s227 = smul.addr %s220, 10
      %s228 = sadd.s32 %s226, %s227
      %s229 = smul.addr %s228, 8
      %s230 = scalar_lea.vmem %s3, %s229
      %p231 = scmp.lt.s32.totalorder %s19, 1
      %s232 = scalar_select %p231, %s19, 1
      %s233 = scalar_lea.vmem %s0, %s232
      %s234 = smul.u32 2, %s21
      %p235 = scmp.lt.s32.totalorder %s19, 1
      %s236 = scalar_select %p235, %s19, 1
      %p237 = scmp.lt.s32.totalorder %s234, 1
      %s238 = scalar_select %p237, %s234, 1
      %s239 = smul.addr %s236, 30
      %s240 = sadd.s32 %s238, %s239
      %s241 = smul.addr %s240, 8
      %s242 = scalar_lea.vmem %s1, %s241
      %s243 = smul.u32 2, %s21
      %s244 = smul.u32 5, %s20
      %p245 = scmp.lt.s32.totalorder %s244, 4
      %s246 = scalar_select %p245, %s244, 4
      %s247 = smul.addr %s246, 8
      %s248 = scalar_lea.vmem %s2, %s247
      %s249 = smul.u32 5, %s20
      %s250 = smul.u32 5, %s20
      %s251 = smul.u32 2, %s21
      %p252 = scmp.lt.s32.totalorder %s19, 1
      %s253 = scalar_select %p252, %s19, 1
      %p254 = scmp.lt.s32.totalorder %s250, 4
      %s255 = scalar_select %p254, %s250, 4
      %p256 = scmp.lt.s32.totalorder %s251, 1
      %s257 = scalar_select %p256, %s251, 1
      %s258 = smul.addr %s255, 2
      %s259 = sadd.s32 %s257, %s258
      %s260 = smul.addr %s253, 10
      %s261 = sadd.s32 %s259, %s260
      %s262 = smul.addr %s261, 8
      %s263 = scalar_lea.vmem %s3, %s262
      %s264 = smul.u32 5, %s20
      %s265 = smul.u32 2, %s21
      %v266 = vld [vmem:[%s233] sm:$0x1]
      %v267 = vxor.u32 %v266, 2147483648
      %v268 = vmul.f32 %v267, 1.442695
      %v269 = vpow.pop %v268
      %v270 = vadd.f32 %v269, 1.0
      %v271 = vrcp.pop %v270
      %v272 = vmul.f32 %v270, %v271
      %v273 = vsub.f32 1.0, %v272
      %v274 = vmul.f32 %v271, %v273
      %v275 = vadd.f32 %v271, %v274
      %vm276 = vweird.f32 %v270
      %vm277 = vweird.f32 %v271
      %vm278 = vmor %vm276, %vm277
      %v279 = vsel %vm278, %v271, %v275
      %v280 = vand.u32 2147483647, %v270
      %vm281 = vcmp.eq.f32.partialorder %v280, 8.507059e+37
      %v282 = vand.u32 %v270, 2147483648
      %v283 = vor.u32 1.1754944e-38, %v282
      %v284 = vsel %vm281, %v283, %v279
      %v285 = vmul.f32 1.0, %v284
      %v286 = vld [vmem:[%s248] sm:$0xff]
      %v287 = vld [vmem:[%s248 + $0x8] sm:$0xff]
      %v288 = vld [vmem:[%s248 + $0x10] sm:$0xff]
      %v289 = vld [vmem:[%s248 + $0x18] sm:$0xff]
      %v290 = vld [vmem:[%s248 + $0x20] sm:$0xff]
      %v292 = vperm.slane %v285, 0
      %v294 = vmul.f32 %v286, %v292
      %v295 = vmul.f32 %v287, %v292
      %v296 = vmul.f32 %v288, %v292
      %v297 = vmul.f32 %v289, %v292
      %v298 = vmul.f32 %v290, %v292
      %v299 = vld [vmem:[%s242] sm:$0xff]
      %v300 = vld [vmem:[%s242 + $0x8] sm:$0xff]
      %v301 = vld [vmem:[%s242 + $0x10] sm:$0xff]
      %v302 = vld [vmem:[%s242 + $0x18] sm:$0xff]
      %v303 = vld [vmem:[%s242 + $0x20] sm:$0xff]
      %v304 = vld [vmem:[%s242 + $0x28] sm:$0xff]
      %v305 = vld [vmem:[%s242 + $0x30] sm:$0xff]
      %v306 = vld [vmem:[%s242 + $0x38] sm:$0xff]
      %v307 = vld [vmem:[%s242 + $0x40] sm:$0xff]
      %v308 = vld [vmem:[%s242 + $0x48] sm:$0xff]
      %v309 = vld [vmem:[%s242 + $0x50] sm:$0xff]
      %v310 = vld [vmem:[%s242 + $0x58] sm:$0xff]
      %v311 = vld [vmem:[%s242 + $0x60] sm:$0xff]
      %v312 = vld [vmem:[%s242 + $0x68] sm:$0xff]
      %v313 = vld [vmem:[%s242 + $0x70] sm:$0xff]
      %v314 = vld [vmem:[%s242 + $0x78] sm:$0xff]
      %v315 = vld [vmem:[%s242 + $0x80] sm:$0xff]
      %v316 = vld [vmem:[%s242 + $0x88] sm:$0xff]
      %v317 = vld [vmem:[%s242 + $0x90] sm:$0xff]
      %v318 = vld [vmem:[%s242 + $0x98] sm:$0xff]
      %v319 = vld [vmem:[%s242 + $0xa0] sm:$0xff]
      %v320 = vld [vmem:[%s242 + $0xa8] sm:$0xff]
      %v321 = vld [vmem:[%s242 + $0xb0] sm:$0xff]
      %v322 = vld [vmem:[%s242 + $0xb8] sm:$0xff]
      %v323 = vld [vmem:[%s242 + $0xc0] sm:$0xff]
      %v324 = vld [vmem:[%s242 + $0xc8] sm:$0xff]
      %v325 = vld [vmem:[%s242 + $0xd0] sm:$0xff]
      %v326 = vld [vmem:[%s242 + $0xd8] sm:$0xff]
      %v327 = vld [vmem:[%s242 + $0xe0] sm:$0xff]
      %v328 = vld [vmem:[%s242 + $0xe8] sm:$0xff]
      %vm329 = vcmask 982016
      %v331 = vsel %vm329, %v294, 0
      %v334 = vsel %vm329, %v295, 0
      %v337 = vsel %vm329, %v296, 0
      %v340 = vsel %vm329, %v297, 0
      %v343 = vsel %vm329, %v298, 0
      %345 = vmatpush.msra.mxu0 0.0
      %346 = vmatpush.msra.mxu0 %v327
      %347 = vmatpush.msra.mxu0 %v325
      %348 = vmatpush.msra.mxu0 %v323
      %349 = vmatpush.msra.mxu0 %v321
      %350 = vmatpush.msra.mxu0 %v319
      %351 = vmatpush.msra.mxu0 %v317
      %352 = vmatpush.msra.mxu0 %v315
      %353 = vmatpush.msra.mxu0 %v313
      %354 = vmatpush.msra.mxu0 %v311
      %355 = vmatpush.msra.mxu0 %v309
      %356 = vmatpush.msra.mxu0 %v307
      %357 = vmatpush.msra.mxu0 %v305
      %358 = vmatpush.msra.mxu0 %v303
      %359 = vmatpush.msra.mxu0 %v301
      %360 = vmatpush.msra.mxu0 %v299
      %361 = vmatmul.f32.gmra.mxu0 %v331
      %v362 = vpop.f32.mrf.mxu0
      %v363 = vadd.f32 0.0, %v362
      %364 = vmatmul.f32.gmra.mxu0 %v334
      %v365 = vpop.f32.mrf.mxu0
      %v366 = vadd.f32 0.0, %v365
      %367 = vmatmul.f32.gmra.mxu0 %v337
      %v368 = vpop.f32.mrf.mxu0
      %v369 = vadd.f32 0.0, %v368
      %370 = vmatmul.f32.gmra.mxu0 %v340
      %v371 = vpop.f32.mrf.mxu0
      %v372 = vadd.f32 0.0, %v371
      %373 = vmatmul.f32.gmra.mxu0 %v343
      %v374 = vpop.f32.mrf.mxu0
      %v375 = vadd.f32 0.0, %v374
      %376 = vdwg.mxu0
      %377 = vmatpush.msra.mxu0 0.0
      %378 = vmatpush.msra.mxu0 %v328
      %379 = vmatpush.msra.mxu0 %v326
      %380 = vmatpush.msra.mxu0 %v324
      %381 = vmatpush.msra.mxu0 %v322
      %382 = vmatpush.msra.mxu0 %v320
      %383 = vmatpush.msra.mxu0 %v318
      %384 = vmatpush.msra.mxu0 %v316
      %385 = vmatpush.msra.mxu0 %v314
      %386 = vmatpush.msra.mxu0 %v312
      %387 = vmatpush.msra.mxu0 %v310
      %388 = vmatpush.msra.mxu0 %v308
      %389 = vmatpush.msra.mxu0 %v306
      %390 = vmatpush.msra.mxu0 %v304
      %391 = vmatpush.msra.mxu0 %v302
      %392 = vmatpush.msra.mxu0 %v300
      %393 = vmatmul.f32.gmra.mxu0 %v331
      %v394 = vpop.f32.mrf.mxu0
      %v395 = vadd.f32 0.0, %v394
      %396 = vmatmul.f32.gmra.mxu0 %v334
      %v397 = vpop.f32.mrf.mxu0
      %v398 = vadd.f32 0.0, %v397
      %399 = vmatmul.f32.gmra.mxu0 %v337
      %v400 = vpop.f32.mrf.mxu0
      %v401 = vadd.f32 0.0, %v400
      %402 = vmatmul.f32.gmra.mxu0 %v340
      %v403 = vpop.f32.mrf.mxu0
      %v404 = vadd.f32 0.0, %v403
      %405 = vmatmul.f32.gmra.mxu0 %v343
      %v406 = vpop.f32.mrf.mxu0
      %v407 = vadd.f32 0.0, %v406
      %408 = vdwg.mxu0
      %409 = vst [vmem:[%s263] sm:$0xff] %v363
      %vm410 = vcmask 556032
      %411 = vst.msk [vmem:[%s263 + $0x8] sm:$0xff] %vm410, %v395
      %412 = vst [vmem:[%s263 + $0x10] sm:$0xff] %v366
      %413 = vst.msk [vmem:[%s263 + $0x18] sm:$0xff] %vm410, %v398
      %414 = vst [vmem:[%s263 + $0x20] sm:$0xff] %v369
      %415 = vst.msk [vmem:[%s263 + $0x28] sm:$0xff] %vm410, %v401
      %416 = vst [vmem:[%s263 + $0x30] sm:$0xff] %v372
      %417 = vst.msk [vmem:[%s263 + $0x38] sm:$0xff] %vm410, %v404
      %418 = vst [vmem:[%s263 + $0x40] sm:$0xff] %v375
      %419 = vst.msk [vmem:[%s263 + $0x48] sm:$0xff] %vm410, %v407
      %s420 = smul.u32 5, %s20
      %s421 = smul.u32 2, %s21
      %p422 = scmp.lt.s32.totalorder %s19, 1
      %s423 = scalar_select %p422, %s19, 1
      %p424 = scmp.lt.s32.totalorder %s420, 4
      %s425 = scalar_select %p424, %s420, 4
      %p426 = scmp.lt.s32.totalorder %s421, 1
      %s427 = scalar_select %p426, %s421, 1
      %s428 = smul.addr %s425, 2
      %s429 = sadd.s32 %s427, %s428
      %s430 = smul.addr %s423, 10
      %s431 = sadd.s32 %s429, %s430
      %s432 = smul.addr %s431, 8
      %s433 = scalar_lea.vmem %s3, %s432
      // Predicated region
      $region33: #{_sigmoid_mul_conv1x1_impl.1} parent=31 // pred_check
        %p434 = pneg %p135
      $region34: #{_sigmoid_mul_conv1x1_impl.1} parent=31 // pred_check_branch
        %436 = sbr.rel (%p434) target = $region36
      $region35: #{_sigmoid_mul_conv1x1_impl.1} parent=31 // pred_region
        %s437 = smul.u32 5, %s20
        %s438 = smul.u32 2, %s21
      $region36: #{_sigmoid_mul_conv1x1_impl.1} parent=31 // pred_fallthru
        _
    $region32: #{_sigmoid_mul_conv1x1_impl.1} parent=5 // pred_fallthru
      _
    %p439 = scmp.le.s32.totalorder 2, %s9
    // Predicated region
    $region37: #{_sigmoid_mul_conv1x1_impl.1} parent=5 // pred_check
      %p440 = pneg %p439
    $region38: #{_sigmoid_mul_conv1x1_impl.1} parent=5 // pred_check_branch
      %442 = sbr.rel (%p440) target = $region40
    $region39: #{_sigmoid_mul_conv1x1_impl.1} parent=5 // pred_region
      %s443 = ssub.s32 %s9, 2
      // Predicated region
      $region41: #{_sigmoid_mul_conv1x1_impl.1} parent=39 // pred_check
        %p444 = pneg %p141
      $region42: #{_sigmoid_mul_conv1x1_impl.1} parent=39 // pred_check_branch
        %446 = sbr.rel (%p444) target = $region44
      $region43: #{_sigmoid_mul_conv1x1_impl.1} parent=39 // pred_region
        %s447 = smul.u32 5, %s23
        %s448 = smul.u32 2, %s24
        %p449 = scmp.lt.s32.totalorder %s22, 1
        %s450 = scalar_select %p449, %s22, 1
        %p451 = scmp.lt.s32.totalorder %s447, 4
        %s452 = scalar_select %p451, %s447, 4
        %p453 = scmp.lt.s32.totalorder %s448, 1
        %s454 = scalar_select %p453, %s448, 1
        %s455 = smul.addr %s452, 2
        %s456 = sadd.s32 %s454, %s455
        %s457 = smul.addr %s450, 10
        %s458 = sadd.s32 %s456, %s457
        %s459 = smul.addr %s458, 8
        %s460 = scalar_lea.vmem %s3, %s459
      $region44: #{_sigmoid_mul_conv1x1_impl.1} parent=39 // pred_fallthru
        _
    $region40: #{_sigmoid_mul_conv1x1_impl.1} parent=5 // pred_fallthru
      _
  $region6: #{_sigmoid_mul_conv1x1_impl.1} parent=0 // loop_footer
    %s13 = sadd.s32 1, %s9
  $region7: #{_sigmoid_mul_conv1x1_impl.1} parent=0 // loop_footer_branch
    %8 = sbr.rel target = $region3
  $region8: #{_sigmoid_mul_conv1x1_impl.1} parent=0 // loop_exit
    _

</llo_original>
